<compile_context>
chip_gen: v6e
topology: v6e:2x2x1
jax: 0.10.0
libtpu: 0.0.40
codegen_flags: <defaults>
</compile_context>

<pallas_src>
import functools

import jax
import jax.numpy as jnp
from jax import lax
from jax.experimental import pallas as pl
from jax.experimental.pallas import tpu as pltpu


def _knn_kernel(center_ref, xyzt_ref, idx_ref, *, k, n, idx_bits):
    """Per (batch, npoint-tile) KNN via packed-key top-k.

    center_ref: (tile_p, D) f32, rows = [-2*c, 1, |c|^2, 0, 0, 0]  (D = 8)
    xyzt_ref:   (D, N)      f32, rows = [x, y, z, |x|^2, 1, 0, 0, 0]
    idx_ref:    (tile_p, k) int32
    """
    c = center_ref[...]                                   # (tile_p, D)
    xt = xyzt_ref[...]                                    # (D, N)
    tile_p = c.shape[0]

    # One MXU matmul gives the true squared distance:
    #   d = -2 c.x + |x|^2 + |c|^2   (scales/norms folded into the padded channels).
    d = jnp.dot(c, xt, preferred_element_type=jnp.float32)        # (tile_p, N), >= 0

    # Order-preserving packed key: d >= 0 so its f32 bit pattern is monotone as int32;
    # replace the low idx_bits mantissa bits with the column index.  A single jnp.min
    # then yields both the winning (truncated) distance and its index; the previous
    # pick is removed by exact key equality (keys are unique per column).
    col_ids = lax.broadcasted_iota(jnp.int32, (1, n), 1)                      # (1, N)
    low_mask = (1 << idx_bits) - 1
    keys = (pltpu.bitcast(d, jnp.int32) & jnp.int32(~low_mask)) | col_ids     # (tile_p, N)

    out_lane = lax.broadcasted_iota(jnp.int32, (tile_p, k), 1)                # (tile_p, k)
    sentinel = jnp.int32(jnp.iinfo(jnp.int32).max)

    idx_acc = jnp.zeros((tile_p, k), jnp.int32)
    km = keys
    for t in range(k):
        best = jnp.min(km, axis=-1, keepdims=True)                # 1 cross-lane reduce / pick
        idx_acc = jnp.where(out_lane == t, best & jnp.int32(low_mask), idx_acc)
        if t + 1 < k:
            km = jnp.where(km == best, sentinel, km)              # 1 full-matrix pass / pick

    idx_ref[...] = idx_acc                                        # single (tile_p, k) store


def _round_up(x, m):
    return (x + m - 1) // m * m


def knn_group_idx(xyz, center, group_size):
    """xyz: [B, N, 3], center: [B, npoint, 3]  ->  idx: [B, npoint, group_size] int32."""
    B, N, _ = xyz.shape
    _, npoint, _ = center.shape
    k = int(group_size)
    assert k <= N, "group_size must be <= number of points"
    D = 8  # coordinate dim 3 padded to 8; extra channels carry |x|^2 / |c|^2 / 1 / zeros
    idx_bits = max(1, int(N - 1).bit_length())

    # npoint tiling: biggest tile whose ~4 live (tile_p, N) 32-bit temporaries stay inside
    # a ~16 MiB working-set budget (scoped-VMEM defaults are 16/32 MiB; v7x physical 64 MiB).
    cap = max(8, (((16 << 20) // (16 * max(N, 1))) // 8) * 8)
    tile_p = int(min(256, cap))
    if B == 1 and npoint > 8:
        # v7x has 2 TensorCores; make sure the "parallel" grid has >= 2 steps.
        tile_p = min(tile_p, _round_up(pl.cdiv(npoint, 2), 8))
    npoint_pad = _round_up(npoint, 8)
    if npoint_pad <= tile_p:
        tile_p = npoint_pad
    else:
        npoint_pad = _round_up(npoint, tile_p)
    num_p_tiles = npoint_pad // tile_p

    # Layout plumbing in the wrapper (cheap, XLA): xyz channel-first (B, D, N) with the
    # norm / ones channels filled; centers pre-scaled by -2 with their norms attached.
    xyz_f = xyz.astype(jnp.float32)
    x2 = jnp.sum(xyz_f * xyz_f, axis=-1)                              # (B, N)
    xyz_t = jnp.zeros((B, D, N), jnp.float32)
    xyz_t = xyz_t.at[:, :3, :].set(jnp.transpose(xyz_f, (0, 2, 1)))
    xyz_t = xyz_t.at[:, 3, :].set(x2)
    xyz_t = xyz_t.at[:, 4, :].set(1.0)

    ctr_f = center.astype(jnp.float32)
    c2 = jnp.sum(ctr_f * ctr_f, axis=-1)                              # (B, npoint)
    ctr = jnp.zeros((B, npoint_pad, D), jnp.float32)
    ctr = ctr.at[:, :npoint, :3].set(-2.0 * ctr_f)
    ctr = ctr.at[:, :npoint, 3].set(1.0)
    ctr = ctr.at[:, :npoint, 4].set(c2)

    flops = 2 * B * npoint_pad * N * D + 3 * k * B * npoint_pad * N
    bytes_accessed = 4 * (B * npoint_pad * D + B * D * N + B * npoint_pad * k)
    # double-buffered I/O blocks + ~4 live (tile_p, N) 32-bit temporaries + headroom
    tile_bytes = (4 * (2 * tile_p * D + 2 * D * N + 2 * tile_p * k)
                  + 4 * 4 * tile_p * N + (2 << 20))
    vmem_limit = int(min(max(tile_bytes, 32 << 20), 48 << 20))   # <= 48 MiB: v7x-safe

    kernel = functools.partial(_knn_kernel, k=k, n=N, idx_bits=idx_bits)
    out = pl.pallas_call(
        kernel,
        out_shape=jax.ShapeDtypeStruct((B, npoint_pad, k), jnp.int32),
        grid=(B, num_p_tiles),
        in_specs=[
            pl.BlockSpec((None, tile_p, D), lambda b, p: (b, p, 0)),   # center slab
            pl.BlockSpec((None, D, N), lambda b, p: (b, 0, 0)),        # xyz^T (const over p)
        ],
        out_specs=pl.BlockSpec((None, tile_p, k), lambda b, p: (b, p, 0)),
        compiler_params=pltpu.CompilerParams(
            dimension_semantics=("parallel", "parallel"),
            vmem_limit_bytes=vmem_limit,
        ),
        cost_estimate=pl.CostEstimate(
            flops=int(flops), transcendentals=0, bytes_accessed=int(bytes_accessed)),
    )(ctr, xyz_t)
    return out[:, :npoint, :]


if __name__ == "__main__":
    # KNNModule has no learnable parameters; only group_size (a hyper-parameter).
    B, N, NPOINT, GROUP_SIZE = 2, 64, 16, 8

    key = jax.random.PRNGKey(0)
    kx, kc = jax.random.split(key)
    xyz = jax.random.normal(kx, (B, N, 3), dtype=jnp.float32)
    center = jax.random.normal(kc, (B, NPOINT, 3), dtype=jnp.float32)

    idx = knn_group_idx(xyz, center, GROUP_SIZE)
    jax.block_until_ready(idx)

    assert idx.shape == (B, NPOINT, GROUP_SIZE) and idx.dtype == jnp.int32

    # Pure-JAX reference.  torch.topk(sorted=False) returns *a* set of k nearest points and
    # leaves tie order unspecified; the packed-key kernel may likewise break near-ties
    # (< ~1e-5 relative) by index, so validate the selected set by its distances:
    #   - all indices in range and distinct per query,
    #   - the selected distance multiset matches the k smallest exact distances.
    d2_ref = jnp.sum((center[:, :, None, :] - xyz[:, None, :, :]) ** 2, axis=-1)   # (B,P,N)
    sel = jnp.take_along_axis(d2_ref, idx, axis=-1)                                 # (B,P,k)
    top = jnp.sort(d2_ref, axis=-1)[..., :GROUP_SIZE]

    assert bool(jnp.all((idx >= 0) & (idx < N)))
    srt = jnp.sort(idx, axis=-1)
    assert bool(jnp.all(srt[..., 1:] != srt[..., :-1]))
    assert bool(jnp.allclose(jnp.sort(sel, axis=-1), top, rtol=1e-3, atol=1e-4))

    print("KERNEL_OK")
</pallas_src>

<mosaic_0001>
module attributes {stable_mosaic.version = 11 : i64} {
  func.func @_knn_kernel(%arg0: i32, %arg1: i32, %arg2: memref<1x16x8xf32, #tpu.memory_space<vmem>>, %arg3: memref<1x8x64xf32, #tpu.memory_space<vmem>>, %arg4: memref<1x16x8xi32, #tpu.memory_space<vmem>>) attributes {dimension_semantics = [#tpu.dimension_semantics<parallel>, #tpu.dimension_semantics<parallel>], iteration_bounds = array<i64: 2, 1>, scalar_prefetch = 0 : i64, scratch_operands = 0 : i64, tpu.core_type = #tpu.core_type<tc>, window_params = [{transform_indices = @transform_0, window_bounds = array<i64: 1, 16, 8>}, {transform_indices = @transform_1, window_bounds = array<i64: 1, 8, 64>}, {transform_indices = @transform_2, window_bounds = array<i64: 1, 16, 8>}]} {
    %c0 = arith.constant 0 : index
    %c0_0 = arith.constant 0 : index
    %c0_1 = arith.constant 0 : index
    %0 = vector.load %arg2[%c0, %c0_0, %c0_1] : memref<1x16x8xf32, #tpu.memory_space<vmem>>, vector<1x16x8xf32>
    %1 = vector.shape_cast %0 : vector<1x16x8xf32> to vector<16x8xf32>
    %c0_2 = arith.constant 0 : index
    %c0_3 = arith.constant 0 : index
    %c0_4 = arith.constant 0 : index
    %2 = vector.load %arg3[%c0_2, %c0_3, %c0_4] : memref<1x8x64xf32, #tpu.memory_space<vmem>>, vector<1x8x64xf32>
    %3 = vector.shape_cast %2 : vector<1x8x64xf32> to vector<8x64xf32>
    %cst = arith.constant dense<0.000000e+00> : vector<16x64xf32>
    %4 = tpu.matmul %1, %3, %cst {dimension_numbers = #tpu.dot_dimension_numbers<[1], [0], [0], [1], [0, 0, 1, 1], [], []>} : vector<16x8xf32>, vector<8x64xf32>, vector<16x64xf32> -> vector<16x64xf32>
    %5 = tpu.iota {dimensions = array<i32: 1>} : vector<1x64xi32>
    %6 = tpu.bitcast %4 : vector<16x64xf32> -> vector<16x64xi32>
    %c-64_i32 = arith.constant -64 : i32
    %7 = vector.broadcast %c-64_i32 : i32 to vector<16x64xi32>
    %8 = arith.andi %6, %7 : vector<16x64xi32>
    %9 = vector.broadcast %5 : vector<1x64xi32> to vector<16x64xi32>
    %10 = arith.ori %8, %9 : vector<16x64xi32>
    %11 = tpu.iota {dimensions = array<i32: 1>} : vector<16x8xi32>
    %c0_i32 = arith.constant 0 : i32
    %12 = vector.broadcast %c0_i32 : i32 to vector<16x8xi32>
    %cst_5 = arith.constant dense<2147483647> : vector<16xi32>
    %13 = vector.multi_reduction <minsi>, %10, %cst_5 [1] : vector<16x64xi32> to vector<16xi32>
    %14 = vector.shape_cast %13 : vector<16xi32> to vector<16x1xi32>
    %c0_i32_6 = arith.constant 0 : i32
    %15 = vector.broadcast %c0_i32_6 : i32 to vector<16x8xi32>
    %16 = arith.cmpi eq, %11, %15 : vector<16x8xi32>
    %c63_i32 = arith.constant 63 : i32
    %17 = vector.broadcast %c63_i32 : i32 to vector<16x1xi32>
    %18 = arith.andi %14, %17 : vector<16x1xi32>
    %19 = vector.shape_cast %18 : vector<16x1xi32> to vector<16x1xi32>
    %20 = vector.broadcast %19 : vector<16x1xi32> to vector<16x8xi32>
    %21 = arith.select %16, %20, %12 : vector<16x8xi1>, vector<16x8xi32>
    %22 = vector.broadcast %14 : vector<16x1xi32> to vector<16x64xi32>
    %23 = arith.cmpi eq, %10, %22 : vector<16x64xi32>
    %c2147483647_i32 = arith.constant 2147483647 : i32
    %24 = vector.broadcast %c2147483647_i32 : i32 to vector<16x64xi32>
    %25 = arith.select %23, %24, %10 : vector<16x64xi1>, vector<16x64xi32>
    %cst_7 = arith.constant dense<2147483647> : vector<16xi32>
    %26 = vector.multi_reduction <minsi>, %25, %cst_7 [1] : vector<16x64xi32> to vector<16xi32>
    %27 = vector.shape_cast %26 : vector<16xi32> to vector<16x1xi32>
    %c1_i32 = arith.constant 1 : i32
    %28 = vector.broadcast %c1_i32 : i32 to vector<16x8xi32>
    %29 = arith.cmpi eq, %11, %28 : vector<16x8xi32>
    %c63_i32_8 = arith.constant 63 : i32
    %30 = vector.broadcast %c63_i32_8 : i32 to vector<16x1xi32>
    %31 = arith.andi %27, %30 : vector<16x1xi32>
    %32 = vector.shape_cast %31 : vector<16x1xi32> to vector<16x1xi32>
    %33 = vector.broadcast %32 : vector<16x1xi32> to vector<16x8xi32>
    %34 = arith.select %29, %33, %21 : vector<16x8xi1>, vector<16x8xi32>
    %35 = vector.broadcast %27 : vector<16x1xi32> to vector<16x64xi32>
    %36 = arith.cmpi eq, %25, %35 : vector<16x64xi32>
    %c2147483647_i32_9 = arith.constant 2147483647 : i32
    %37 = vector.broadcast %c2147483647_i32_9 : i32 to vector<16x64xi32>
    %38 = arith.select %36, %37, %25 : vector<16x64xi1>, vector<16x64xi32>
    %cst_10 = arith.constant dense<2147483647> : vector<16xi32>
    %39 = vector.multi_reduction <minsi>, %38, %cst_10 [1] : vector<16x64xi32> to vector<16xi32>
    %40 = vector.shape_cast %39 : vector<16xi32> to vector<16x1xi32>
    %c2_i32 = arith.constant 2 : i32
    %41 = vector.broadcast %c2_i32 : i32 to vector<16x8xi32>
    %42 = arith.cmpi eq, %11, %41 : vector<16x8xi32>
    %c63_i32_11 = arith.constant 63 : i32
    %43 = vector.broadcast %c63_i32_11 : i32 to vector<16x1xi32>
    %44 = arith.andi %40, %43 : vector<16x1xi32>
    %45 = vector.shape_cast %44 : vector<16x1xi32> to vector<16x1xi32>
    %46 = vector.broadcast %45 : vector<16x1xi32> to vector<16x8xi32>
    %47 = arith.select %42, %46, %34 : vector<16x8xi1>, vector<16x8xi32>
    %48 = vector.broadcast %40 : vector<16x1xi32> to vector<16x64xi32>
    %49 = arith.cmpi eq, %38, %48 : vector<16x64xi32>
    %c2147483647_i32_12 = arith.constant 2147483647 : i32
    %50 = vector.broadcast %c2147483647_i32_12 : i32 to vector<16x64xi32>
    %51 = arith.select %49, %50, %38 : vector<16x64xi1>, vector<16x64xi32>
    %cst_13 = arith.constant dense<2147483647> : vector<16xi32>
    %52 = vector.multi_reduction <minsi>, %51, %cst_13 [1] : vector<16x64xi32> to vector<16xi32>
    %53 = vector.shape_cast %52 : vector<16xi32> to vector<16x1xi32>
    %c3_i32 = arith.constant 3 : i32
    %54 = vector.broadcast %c3_i32 : i32 to vector<16x8xi32>
    %55 = arith.cmpi eq, %11, %54 : vector<16x8xi32>
    %c63_i32_14 = arith.constant 63 : i32
    %56 = vector.broadcast %c63_i32_14 : i32 to vector<16x1xi32>
    %57 = arith.andi %53, %56 : vector<16x1xi32>
    %58 = vector.shape_cast %57 : vector<16x1xi32> to vector<16x1xi32>
    %59 = vector.broadcast %58 : vector<16x1xi32> to vector<16x8xi32>
    %60 = arith.select %55, %59, %47 : vector<16x8xi1>, vector<16x8xi32>
    %61 = vector.broadcast %53 : vector<16x1xi32> to vector<16x64xi32>
    %62 = arith.cmpi eq, %51, %61 : vector<16x64xi32>
    %c2147483647_i32_15 = arith.constant 2147483647 : i32
    %63 = vector.broadcast %c2147483647_i32_15 : i32 to vector<16x64xi32>
    %64 = arith.select %62, %63, %51 : vector<16x64xi1>, vector<16x64xi32>
    %cst_16 = arith.constant dense<2147483647> : vector<16xi32>
    %65 = vector.multi_reduction <minsi>, %64, %cst_16 [1] : vector<16x64xi32> to vector<16xi32>
    %66 = vector.shape_cast %65 : vector<16xi32> to vector<16x1xi32>
    %c4_i32 = arith.constant 4 : i32
    %67 = vector.broadcast %c4_i32 : i32 to vector<16x8xi32>
    %68 = arith.cmpi eq, %11, %67 : vector<16x8xi32>
    %c63_i32_17 = arith.constant 63 : i32
    %69 = vector.broadcast %c63_i32_17 : i32 to vector<16x1xi32>
    %70 = arith.andi %66, %69 : vector<16x1xi32>
    %71 = vector.shape_cast %70 : vector<16x1xi32> to vector<16x1xi32>
    %72 = vector.broadcast %71 : vector<16x1xi32> to vector<16x8xi32>
    %73 = arith.select %68, %72, %60 : vector<16x8xi1>, vector<16x8xi32>
    %74 = vector.broadcast %66 : vector<16x1xi32> to vector<16x64xi32>
    %75 = arith.cmpi eq, %64, %74 : vector<16x64xi32>
    %c2147483647_i32_18 = arith.constant 2147483647 : i32
    %76 = vector.broadcast %c2147483647_i32_18 : i32 to vector<16x64xi32>
    %77 = arith.select %75, %76, %64 : vector<16x64xi1>, vector<16x64xi32>
    %cst_19 = arith.constant dense<2147483647> : vector<16xi32>
    %78 = vector.multi_reduction <minsi>, %77, %cst_19 [1] : vector<16x64xi32> to vector<16xi32>
    %79 = vector.shape_cast %78 : vector<16xi32> to vector<16x1xi32>
    %c5_i32 = arith.constant 5 : i32
    %80 = vector.broadcast %c5_i32 : i32 to vector<16x8xi32>
    %81 = arith.cmpi eq, %11, %80 : vector<16x8xi32>
    %c63_i32_20 = arith.constant 63 : i32
    %82 = vector.broadcast %c63_i32_20 : i32 to vector<16x1xi32>
    %83 = arith.andi %79, %82 : vector<16x1xi32>
    %84 = vector.shape_cast %83 : vector<16x1xi32> to vector<16x1xi32>
    %85 = vector.broadcast %84 : vector<16x1xi32> to vector<16x8xi32>
    %86 = arith.select %81, %85, %73 : vector<16x8xi1>, vector<16x8xi32>
    %87 = vector.broadcast %79 : vector<16x1xi32> to vector<16x64xi32>
    %88 = arith.cmpi eq, %77, %87 : vector<16x64xi32>
    %c2147483647_i32_21 = arith.constant 2147483647 : i32
    %89 = vector.broadcast %c2147483647_i32_21 : i32 to vector<16x64xi32>
    %90 = arith.select %88, %89, %77 : vector<16x64xi1>, vector<16x64xi32>
    %cst_22 = arith.constant dense<2147483647> : vector<16xi32>
    %91 = vector.multi_reduction <minsi>, %90, %cst_22 [1] : vector<16x64xi32> to vector<16xi32>
    %92 = vector.shape_cast %91 : vector<16xi32> to vector<16x1xi32>
    %c6_i32 = arith.constant 6 : i32
    %93 = vector.broadcast %c6_i32 : i32 to vector<16x8xi32>
    %94 = arith.cmpi eq, %11, %93 : vector<16x8xi32>
    %c63_i32_23 = arith.constant 63 : i32
    %95 = vector.broadcast %c63_i32_23 : i32 to vector<16x1xi32>
    %96 = arith.andi %92, %95 : vector<16x1xi32>
    %97 = vector.shape_cast %96 : vector<16x1xi32> to vector<16x1xi32>
    %98 = vector.broadcast %97 : vector<16x1xi32> to vector<16x8xi32>
    %99 = arith.select %94, %98, %86 : vector<16x8xi1>, vector<16x8xi32>
    %100 = vector.broadcast %92 : vector<16x1xi32> to vector<16x64xi32>
    %101 = arith.cmpi eq, %90, %100 : vector<16x64xi32>
    %c2147483647_i32_24 = arith.constant 2147483647 : i32
    %102 = vector.broadcast %c2147483647_i32_24 : i32 to vector<16x64xi32>
    %103 = arith.select %101, %102, %90 : vector<16x64xi1>, vector<16x64xi32>
    %cst_25 = arith.constant dense<2147483647> : vector<16xi32>
    %104 = vector.multi_reduction <minsi>, %103, %cst_25 [1] : vector<16x64xi32> to vector<16xi32>
    %105 = vector.shape_cast %104 : vector<16xi32> to vector<16x1xi32>
    %c7_i32 = arith.constant 7 : i32
    %106 = vector.broadcast %c7_i32 : i32 to vector<16x8xi32>
    %107 = arith.cmpi eq, %11, %106 : vector<16x8xi32>
    %c63_i32_26 = arith.constant 63 : i32
    %108 = vector.broadcast %c63_i32_26 : i32 to vector<16x1xi32>
    %109 = arith.andi %105, %108 : vector<16x1xi32>
    %110 = vector.shape_cast %109 : vector<16x1xi32> to vector<16x1xi32>
    %111 = vector.broadcast %110 : vector<16x1xi32> to vector<16x8xi32>
    %112 = arith.select %107, %111, %99 : vector<16x8xi1>, vector<16x8xi32>
    %c0_27 = arith.constant 0 : index
    %c0_28 = arith.constant 0 : index
    %c0_29 = arith.constant 0 : index
    %113 = vector.load %arg4[%c0_27, %c0_28, %c0_29] : memref<1x16x8xi32, #tpu.memory_space<vmem>>, vector<1x16x8xi32>
    %114 = vector.shape_cast %113 : vector<1x16x8xi32> to vector<16x8xi32>
    %115 = vector.shape_cast %112 : vector<16x8xi32> to vector<1x16x8xi32>
    tpu.vector_store %arg4[%c0_27, %c0_28, %c0_29], %115 {strides = array<i32>} : memref<1x16x8xi32, #tpu.memory_space<vmem>>, vector<1x16x8xi32>,
    return
  }
  func.func @transform_0(%arg0: i32, %arg1: i32) -> (i32, i32, i32) {
    %c0_i32 = arith.constant 0 : i32
    %c0_i32_0 = arith.constant 0 : i32
    return %arg0, %arg1, %c0_i32 : i32, i32, i32
  }
  func.func @transform_1(%arg0: i32, %arg1: i32) -> (i32, i32, i32) {
    %c0_i32 = arith.constant 0 : i32
    %c0_i32_0 = arith.constant 0 : i32
    %c0_i32_1 = arith.constant 0 : i32
    return %arg0, %c0_i32, %c0_i32_0 : i32, i32, i32
  }
  func.func @transform_2(%arg0: i32, %arg1: i32) -> (i32, i32, i32) {
    %c0_i32 = arith.constant 0 : i32
    %c0_i32_0 = arith.constant 0 : i32
    return %arg0, %arg1, %c0_i32 : i32, i32, i32
  }
}

</mosaic_0001>

<llo_original>
// kernel: tpu_custom_call.1
$region0: #{tpu_custom_call.1}
  #allocation0 [shape = 'u32[]', space=smem, size = 0x4, offset = 0x4, fixed_abs, tag = 'smem constant byte address 0x4 - core index']
  #allocation1 [shape = 'u32[144,128]{1,0:T(1,128)}', space=vmem, size = 0x12000, scoped, tag = 'internal scratch']
  %s0 = inlined_call_operand.vmem [shape: f32[2,16,8], index: 0, kind: input, shape index: {}]
  %s1 = inlined_call_operand.vmem [shape: f32[2,8,64], index: 1, kind: input, shape index: {}]
  %s2 = inlined_call_operand.vmem [shape: s32[2,16,8], index: 2, kind: output, shape index: {}]
  %s3 = sld [smem:[#allocation0]]
  $region41: #{tpu_custom_call.1} parent=0
    _
  %s5 = ssub.s32 1, %s3
  %s6 = scalar_select 0, %s5, %s3
  loop: start=0, step=1, limit=4
  $region2: #{tpu_custom_call.1} parent=0 // loop_pre_header
    _
  $region3: #{tpu_custom_call.1} parent=0 // loop_header
    %s8 = sphi 0, %s12
    %p9 = scmp.ge.s32.totalorder %s8, 4
    %s15 = sphi 0, %s27
    %s16 = sphi 0, %s23
    %s17 = sphi 0, %s15
    %s18 = sphi 0, %s16
    %s19 = sphi 0, %s17
    %s20 = sphi 0, %s18
    %s32 = sphi 0, %s34
    %s35 = sphi 0, %s32
    %s36 = sphi 0, %s35
    %s52 = sphi 0, %s36
    %s58 = sphi 0, %s60
    %s61 = sphi 0, %s58
    %s62 = sphi 0, %s61
    %s78 = sphi 0, %s62
    %s86 = sphi 0, %s88
    %s89 = sphi 0, %s86
    %s90 = sphi 0, %s89
    %s106 = sphi 0, %s90
  $region4: #{tpu_custom_call.1} parent=0 // loop_header_branch
    %11 = sbr.rel (%p9) target = $region8
  $region5: #{tpu_custom_call.1} parent=0 // loop_body
    %s13 = ssub.s32 %s8, 1
    %s14 = ssub.s32 %s8, 2
    %s21 = sadd.s32 1, %s16
    %p22 = scmp.ge.s32.totalorder %s21, 1
    %s23 = scalar_select %p22, 0, %s21
    %s24 = sadd.s32 1, %s15
    %s25 = scalar_select %p22, %s24, %s15
    %p26 = scmp.ge.s32.totalorder %s25, 2
    %s27 = scalar_select %p26, 0, %s25
    %s28 = ssub.s32 %s15, %s27
    %s29 = ssub.s32 %s16, %s23
    %s30 = sor.u32 %s28, %s29
    %p31 = scmp.eq.s32.totalorder %s30, 0
    %s33 = sadd.s32 %s32, 1
    %s34 = scalar_select %p31, %s32, %s33
    %p37 = pneg %p31
    %p38 = scmp.eq.s32.totalorder %s8, 1
    %p39 = por %p37, %p38
    %p40 = scmp.ne.s32.totalorder %s32, %s35
    %p41 = scmp.eq.s32.totalorder %s8, 0
    %p42 = por %p40, %p41
    %p43 = scmp.ne.s32.totalorder %s32, %s35
    %p44 = scmp.eq.s32.totalorder %s13, 1
    %p45 = por %p43, %p44
    %p46 = scmp.ne.s32.totalorder %s35, %s36
    %p47 = scmp.eq.s32.totalorder %s13, 0
    %p48 = por %p46, %p47
    %p49 = scmp.ne.s32.totalorder %s35, %s36
    %p50 = scmp.eq.s32.totalorder %s14, 1
    %p51 = por %p49, %p50
    %p53 = scmp.ne.s32.totalorder %s36, %s52
    %p54 = scmp.eq.s32.totalorder %s14, 0
    %p55 = por %p53, %p54
    %s56 = ssub.s32 %s15, %s27
    %p57 = scmp.eq.s32.totalorder %s56, 0
    %s59 = sadd.s32 %s58, 1
    %s60 = scalar_select %p57, %s58, %s59
    %p63 = pneg %p57
    %p64 = scmp.eq.s32.totalorder %s8, 1
    %p65 = por %p63, %p64
    %p66 = scmp.ne.s32.totalorder %s58, %s61
    %p67 = scmp.eq.s32.totalorder %s8, 0
    %p68 = por %p66, %p67
    %p69 = scmp.ne.s32.totalorder %s58, %s61
    %p70 = scmp.eq.s32.totalorder %s13, 1
    %p71 = por %p69, %p70
    %p72 = scmp.ne.s32.totalorder %s61, %s62
    %p73 = scmp.eq.s32.totalorder %s13, 0
    %p74 = por %p72, %p73
    %p75 = scmp.ne.s32.totalorder %s61, %s62
    %p76 = scmp.eq.s32.totalorder %s14, 1
    %p77 = por %p75, %p76
    %p79 = scmp.ne.s32.totalorder %s62, %s78
    %p80 = scmp.eq.s32.totalorder %s14, 0
    %p81 = por %p79, %p80
    %s82 = ssub.s32 %s15, %s27
    %s83 = ssub.s32 %s16, %s23
    %s84 = sor.u32 %s82, %s83
    %p85 = scmp.eq.s32.totalorder %s84, 0
    %s87 = sadd.s32 %s86, 1
    %s88 = scalar_select %p85, %s86, %s87
    %p91 = pneg %p85
    %p92 = scmp.eq.s32.totalorder %s8, 1
    %p93 = por %p91, %p92
    %p94 = scmp.ne.s32.totalorder %s86, %s89
    %p95 = scmp.eq.s32.totalorder %s8, 0
    %p96 = por %p94, %p95
    %p97 = scmp.ne.s32.totalorder %s86, %s89
    %p98 = scmp.eq.s32.totalorder %s13, 1
    %p99 = por %p97, %p98
    %p100 = scmp.ne.s32.totalorder %s89, %s90
    %p101 = scmp.eq.s32.totalorder %s13, 0
    %p102 = por %p100, %p101
    %p103 = scmp.ne.s32.totalorder %s89, %s90
    %p104 = scmp.eq.s32.totalorder %s14, 1
    %p105 = por %p103, %p104
    %p107 = scmp.ne.s32.totalorder %s90, %s106
    %p108 = scmp.eq.s32.totalorder %s14, 0
    %p109 = por %p107, %p108
    %p110 = scmp.le.s32.totalorder 1, %s8
    %p111 = scmp.lt.s32.totalorder %s8, 3
    %p112 = pnand %p110, %p111
    %p113 = pneg %p112
    // Predicated region
    $region9: #{tpu_custom_call.1} parent=5 // pred_check
      _
    $region10: #{tpu_custom_call.1} parent=5 // pred_check_branch
      %115 = sbr.rel (%p112) target = $region12
    $region11: #{tpu_custom_call.1} parent=5 // pred_region
      %s116 = ssub.s32 %s8, 1
    $region12: #{tpu_custom_call.1} parent=5 // pred_fallthru
      _
    %p117 = scmp.lt.s32.totalorder %s8, 2
    // Predicated region
    $region13: #{tpu_custom_call.1} parent=5 // pred_check
      %p118 = pneg %p117
    $region14: #{tpu_custom_call.1} parent=5 // pred_check_branch
      %120 = sbr.rel (%p118) target = $region16
    $region15: #{tpu_custom_call.1} parent=5 // pred_region
      // Predicated region
      $region17: #{tpu_custom_call.1} parent=15 // pred_check
        %p121 = pneg %p42
      $region18: #{tpu_custom_call.1} parent=15 // pred_check_branch
        %123 = sbr.rel (%p121) target = $region20
      $region19: #{tpu_custom_call.1} parent=15 // pred_region
        %s124 = smul.u32 2, %s16
        %p125 = scmp.lt.s32.totalorder %s15, 1
        %s126 = scalar_select %p125, %s15, 1
        %p127 = scmp.lt.s32.totalorder %s124, 1
        %s128 = scalar_select %p127, %s124, 1
        %s129 = smul.addr %s126, 2
        %s130 = sadd.s32 %s128, %s129
        %s131 = smul.addr %s130, 8
        %s132 = scalar_lea.vmem %s0, %s131
        %s133 = smul.u32 2, %s16
      $region20: #{tpu_custom_call.1} parent=15 // pred_fallthru
        _
      // Predicated region
      $region21: #{tpu_custom_call.1} parent=15 // pred_check
        %p134 = pneg %p68
      $region22: #{tpu_custom_call.1} parent=15 // pred_check_branch
        %136 = sbr.rel (%p134) target = $region24
      $region23: #{tpu_custom_call.1} parent=15 // pred_region
        %p137 = scmp.lt.s32.totalorder %s15, 1
        %s138 = scalar_select %p137, %s15, 1
        %s139 = smul.addr %s138, 8
        %s140 = scalar_lea.vmem %s1, %s139
      $region24: #{tpu_custom_call.1} parent=15 // pred_fallthru
        _
    $region16: #{tpu_custom_call.1} parent=5 // pred_fallthru
      _
    %p141 = scmp.le.s32.totalorder 1, %s8
    %p142 = scmp.lt.s32.totalorder %s8, 3
    %p143 = pnand %p141, %p142
    %p144 = pneg %p143
    // Predicated region
    $region25: #{tpu_custom_call.1} parent=5 // pred_check
      _
    $region26: #{tpu_custom_call.1} parent=5 // pred_check_branch
      %146 = sbr.rel (%p143) target = $region28
    $region27: #{tpu_custom_call.1} parent=5 // pred_region
      %s147 = ssub.s32 %s8, 1
      %s148 = smul.u32 2, %s18
      %p149 = scmp.lt.s32.totalorder %s17, 1
      %s150 = scalar_select %p149, %s17, 1
      %p151 = scmp.lt.s32.totalorder %s148, 1
      %s152 = scalar_select %p151, %s148, 1
      %s153 = smul.addr %s150, 2
      %s154 = sadd.s32 %s152, %s153
      %s155 = smul.addr %s154, 8
      %s156 = scalar_lea.vmem %s0, %s155
      %p157 = pneg %p48
      %p158 = pneg %p45
      %p159 = scmp.lt.s32.totalorder %s17, 1
      %s160 = scalar_select %p159, %s17, 1
      %s161 = smul.addr %s160, 8
      %s162 = scalar_lea.vmem %s1, %s161
      %p163 = pneg %p74
      %p164 = pneg %p71
      %p165 = pneg %p102
      %p166 = pneg %p99
      %s167 = smul.u32 2, %s18
      %p168 = scmp.lt.s32.totalorder %s17, 1
      %s169 = scalar_select %p168, %s17, 1
      %p170 = scmp.lt.s32.totalorder %s167, 1
      %s171 = scalar_select %p170, %s167, 1
      %s172 = smul.addr %s169, 2
      %s173 = sadd.s32 %s171, %s172
      %s174 = smul.addr %s173, 8
      %s175 = scalar_lea.vmem %s2, %s174
      %s176 = smul.u32 2, %s18
      %p177 = scmp.lt.s32.totalorder %s17, 1
      %s178 = scalar_select %p177, %s17, 1
      %p179 = scmp.lt.s32.totalorder %s176, 1
      %s180 = scalar_select %p179, %s176, 1
      %s181 = smul.addr %s178, 2
      %s182 = sadd.s32 %s180, %s181
      %s183 = smul.addr %s182, 8
      %s184 = scalar_lea.vmem %s0, %s183
      %s185 = smul.u32 2, %s18
      %p186 = scmp.lt.s32.totalorder %s17, 1
      %s187 = scalar_select %p186, %s17, 1
      %s188 = smul.addr %s187, 8
      %s189 = scalar_lea.vmem %s1, %s188
      %s190 = smul.u32 2, %s18
      %p191 = scmp.lt.s32.totalorder %s17, 1
      %s192 = scalar_select %p191, %s17, 1
      %p193 = scmp.lt.s32.totalorder %s190, 1
      %s194 = scalar_select %p193, %s190, 1
      %s195 = smul.addr %s192, 2
      %s196 = sadd.s32 %s194, %s195
      %s197 = smul.addr %s196, 8
      %s198 = scalar_lea.vmem %s2, %s197
      %s199 = smul.u32 2, %s18
      %v200 = vld [vmem:[%s184] sm:$0xff]
      %v201 = vld [vmem:[%s184 + $0x8] sm:$0xff]
      %v202 = vld [vmem:[%s189] sm:$0xff]
      %vm203 = vcmask 64512
      %v205 = vsel %vm203, %v200, 0
      %v208 = vsel %vm203, %v201, 0
      %210 = vmatprep.subr.mxu0 0.0
      %211 = vmatpush1.msra.mxu0 0.0
      %212 = vmatprep.subr.mxu0 0.0
      %213 = vmatpush1.msra.mxu0 0.0
      %214 = vmatprep.subr.mxu0 0.0
      %215 = vmatpush1.msra.mxu0 0.0
      %216 = vmatprep.subr.mxu0 0.0
      %217 = vmatpush1.msra.mxu0 0.0
      %218 = vmatprep.subr.mxu0 0.0
      %219 = vmatpush1.msra.mxu0 0.0
      %220 = vmatprep.subr.mxu0 0.0
      %221 = vmatpush1.msra.mxu0 0.0
      %222 = vmatprep.subr.mxu0 0.0
      %223 = vmatpush1.msra.mxu0 0.0
      %224 = vmatprep.subr.mxu0 0.0
      %225 = vmatpush1.msra.mxu0 0.0
      %226 = vmatprep.subr.mxu0 0.0
      %227 = vmatpush1.msra.mxu0 0.0
      %228 = vmatprep.subr.mxu0 0.0
      %229 = vmatpush1.msra.mxu0 0.0
      %230 = vmatprep.subr.mxu0 0.0
      %231 = vmatpush1.msra.mxu0 0.0
      %232 = vmatprep.subr.mxu0 0.0
      %233 = vmatpush1.msra.mxu0 0.0
      %234 = vmatprep.subr.mxu0 0.0
      %235 = vmatpush1.msra.mxu0 0.0
      %236 = vmatprep.subr.mxu0 0.0
      %237 = vmatpush1.msra.mxu0 0.0
      %238 = vmatprep.subr.mxu0 0.0
      %239 = vmatpush1.msra.mxu0 0.0
      %240 = vmatprep.subr.mxu0 0.0
      %241 = vmatpush1.msra.mxu0 %v202
      %242 = vmatprep.subr.mxu0 0.0
      %243 = vmatpush2.msra.mxu0 0.0
      %244 = vmatprep.subr.mxu0 0.0
      %245 = vmatpush2.msra.mxu0 0.0
      %246 = vmatprep.subr.mxu0 0.0
      %247 = vmatpush2.msra.mxu0 0.0
      %248 = vmatprep.subr.mxu0 0.0
      %249 = vmatpush2.msra.mxu0 0.0
      %250 = vmatprep.subr.mxu0 0.0
      %251 = vmatpush2.msra.mxu0 0.0
      %252 = vmatprep.subr.mxu0 0.0
      %253 = vmatpush2.msra.mxu0 0.0
      %254 = vmatprep.subr.mxu0 0.0
      %255 = vmatpush2.msra.mxu0 0.0
      %256 = vmatprep.subr.mxu0 0.0
      %257 = vmatpush2.msra.mxu0 0.0
      %258 = vmatprep.subr.mxu0 0.0
      %259 = vmatpush2.msra.mxu0 0.0
      %260 = vmatprep.subr.mxu0 0.0
      %261 = vmatpush2.msra.mxu0 0.0
      %262 = vmatprep.subr.mxu0 0.0
      %263 = vmatpush2.msra.mxu0 0.0
      %264 = vmatprep.subr.mxu0 0.0
      %265 = vmatpush2.msra.mxu0 0.0
      %266 = vmatprep.subr.mxu0 0.0
      %267 = vmatpush2.msra.mxu0 0.0
      %268 = vmatprep.subr.mxu0 0.0
      %269 = vmatpush2.msra.mxu0 0.0
      %270 = vmatprep.subr.mxu0 0.0
      %271 = vmatpush2.msra.mxu0 0.0
      %272 = vmatprep.subr.mxu0 0.0
      %273 = vmatpush2.msra.mxu0 0.0
      %274 = vmatprep.mubr.f32.mxu0 0.0
      %275 = vmatmul.mubr.f32.gmra.mxu0 %v205
      %v276 = vpop.f32.mrf.mxu0
      %v277 = vadd.f32 0.0, %v276
      %v278 = vpop.f32.mrf.mxu0
      %279 = vmatprep.mubr.f32.mxu0 0.0
      %280 = vmatmul.mubr.f32.gmra.mxu0 %v208
      %v281 = vpop.f32.mrf.mxu0
      %v282 = vadd.f32 0.0, %v281
      %v283 = vpop.f32.mrf.mxu0
      %284 = vdwg.mxu0
      %v285 = vlaneseq
      %v286 = vand.u32 %v285, 127
      %v289 = vand.u32 %v277, 4294967232
      %v290 = vand.u32 %v282, 4294967232
      %v291 = vor.u32 %v289, %v286
      %v292 = vor.u32 %v290, %v286
      %vm293 = vcmask 523264
      %v294 = vsel %vm293, %v291, 2147483647
      %v295 = vand.u32 %v294, 65535
      %v296 = vshra.s32 %v294, 16
      %v297 = vcvt.s32.f32 %v295
      %v298 = vcvt.s32.f32 %v296
      %299 = vmin.xlane.f32.xlu0 %v298
      %v300 = vpop.xlane.xlu0 %299
      %vm301 = vcmp.eq.f32.partialorder %v298, %v300
      %v302 = vsel %vm301, %v297, inf
      %303 = vmin.xlane.f32.xlu0 %v302
      %v304 = vpop.xlane.xlu0 %303
      %v305 = vcvt.f32.s32 %v304
      %v306 = vcvt.f32.s32 %v300
      %v307 = vshll.u32 %v306, 16
      %v308 = vadd.s32 %v307, %v305
      %v309 = vsel %vm293, %v292, 2147483647
      %v310 = vand.u32 %v309, 65535
      %v311 = vshra.s32 %v309, 16
      %v312 = vcvt.s32.f32 %v310
      %v313 = vcvt.s32.f32 %v311
      %314 = vmin.xlane.f32.xlu0 %v313
      %v315 = vpop.xlane.xlu0 %314
      %vm316 = vcmp.eq.f32.partialorder %v313, %v315
      %v317 = vsel %vm316, %v312, inf
      %318 = vmin.xlane.f32.xlu0 %v317
      %v319 = vpop.xlane.xlu0 %318
      %v320 = vcvt.f32.s32 %v319
      %v321 = vcvt.f32.s32 %v315
      %v322 = vshll.u32 %v321, 16
      %v323 = vadd.s32 %v322, %v320
      %vm324 = vcmp.eq.s32.totalorder %v286, 0
      %v325 = vand.u32 %v308, 63
      %v326 = vand.u32 %v323, 63
      %v327 = vsel %vm324, %v325, 0
      %v328 = vsel %vm324, %v326, 0
      %vm329 = vcmp.eq.s32.totalorder %v291, %v308
      %vm330 = vcmp.eq.s32.totalorder %v292, %v323
      %v331 = vsel %vm329, 2147483647, %v291
      %v332 = vsel %vm330, 2147483647, %v292
      %v333 = vsel %vm293, %v331, 2147483647
      %v334 = vand.u32 %v333, 65535
      %v335 = vshra.s32 %v333, 16
      %v336 = vcvt.s32.f32 %v334
      %v337 = vcvt.s32.f32 %v335
      %338 = vmin.xlane.f32.xlu0 %v337
      %v339 = vpop.xlane.xlu0 %338
      %vm340 = vcmp.eq.f32.partialorder %v337, %v339
      %v341 = vsel %vm340, %v336, inf
      %342 = vmin.xlane.f32.xlu0 %v341
      %v343 = vpop.xlane.xlu0 %342
      %v344 = vcvt.f32.s32 %v343
      %v345 = vcvt.f32.s32 %v339
      %v346 = vshll.u32 %v345, 16
      %v347 = vadd.s32 %v346, %v344
      %v348 = vsel %vm293, %v332, 2147483647
      %v349 = vand.u32 %v348, 65535
      %v350 = vshra.s32 %v348, 16
      %v351 = vcvt.s32.f32 %v349
      %v352 = vcvt.s32.f32 %v350
      %353 = vmin.xlane.f32.xlu0 %v352
      %v354 = vpop.xlane.xlu0 %353
      %vm355 = vcmp.eq.f32.partialorder %v352, %v354
      %v356 = vsel %vm355, %v351, inf
      %357 = vmin.xlane.f32.xlu0 %v356
      %v358 = vpop.xlane.xlu0 %357
      %v359 = vcvt.f32.s32 %v358
      %v360 = vcvt.f32.s32 %v354
      %v361 = vshll.u32 %v360, 16
      %v362 = vadd.s32 %v361, %v359
      %vm363 = vcmp.eq.s32.totalorder %v286, 1
      %v364 = vand.u32 %v347, 63
      %v365 = vand.u32 %v362, 63
      %v366 = vsel %vm363, %v364, %v327
      %v367 = vsel %vm363, %v365, %v328
      %vm368 = vcmp.eq.s32.totalorder %v331, %v347
      %vm369 = vcmp.eq.s32.totalorder %v332, %v362
      %v370 = vsel %vm368, 2147483647, %v331
      %v371 = vsel %vm369, 2147483647, %v332
      %v372 = vsel %vm293, %v370, 2147483647
      %v373 = vand.u32 %v372, 65535
      %v374 = vshra.s32 %v372, 16
      %v375 = vcvt.s32.f32 %v373
      %v376 = vcvt.s32.f32 %v374
      %377 = vmin.xlane.f32.xlu0 %v376
      %v378 = vpop.xlane.xlu0 %377
      %vm379 = vcmp.eq.f32.partialorder %v376, %v378
      %v380 = vsel %vm379, %v375, inf
      %381 = vmin.xlane.f32.xlu0 %v380
      %v382 = vpop.xlane.xlu0 %381
      %v383 = vcvt.f32.s32 %v382
      %v384 = vcvt.f32.s32 %v378
      %v385 = vshll.u32 %v384, 16
      %v386 = vadd.s32 %v385, %v383
      %v387 = vsel %vm293, %v371, 2147483647
      %v388 = vand.u32 %v387, 65535
      %v389 = vshra.s32 %v387, 16
      %v390 = vcvt.s32.f32 %v388
      %v391 = vcvt.s32.f32 %v389
      %392 = vmin.xlane.f32.xlu0 %v391
      %v393 = vpop.xlane.xlu0 %392
      %vm394 = vcmp.eq.f32.partialorder %v391, %v393
      %v395 = vsel %vm394, %v390, inf
      %396 = vmin.xlane.f32.xlu0 %v395
      %v397 = vpop.xlane.xlu0 %396
      %v398 = vcvt.f32.s32 %v397
      %v399 = vcvt.f32.s32 %v393
      %v400 = vshll.u32 %v399, 16
      %v401 = vadd.s32 %v400, %v398
      %vm402 = vcmp.eq.s32.totalorder %v286, 2
      %v403 = vand.u32 %v386, 63
      %v404 = vand.u32 %v401, 63
      %v405 = vsel %vm402, %v403, %v366
      %v406 = vsel %vm402, %v404, %v367
      %vm407 = vcmp.eq.s32.totalorder %v370, %v386
      %vm408 = vcmp.eq.s32.totalorder %v371, %v401
      %v409 = vsel %vm407, 2147483647, %v370
      %v410 = vsel %vm408, 2147483647, %v371
      %v411 = vsel %vm293, %v409, 2147483647
      %v412 = vand.u32 %v411, 65535
      %v413 = vshra.s32 %v411, 16
      %v414 = vcvt.s32.f32 %v412
      %v415 = vcvt.s32.f32 %v413
      %416 = vmin.xlane.f32.xlu0 %v415
      %v417 = vpop.xlane.xlu0 %416
      %vm418 = vcmp.eq.f32.partialorder %v415, %v417
      %v419 = vsel %vm418, %v414, inf
      %420 = vmin.xlane.f32.xlu0 %v419
      %v421 = vpop.xlane.xlu0 %420
      %v422 = vcvt.f32.s32 %v421
      %v423 = vcvt.f32.s32 %v417
      %v424 = vshll.u32 %v423, 16
      %v425 = vadd.s32 %v424, %v422
      %v426 = vsel %vm293, %v410, 2147483647
      %v427 = vand.u32 %v426, 65535
      %v428 = vshra.s32 %v426, 16
      %v429 = vcvt.s32.f32 %v427
      %v430 = vcvt.s32.f32 %v428
      %431 = vmin.xlane.f32.xlu0 %v430
      %v432 = vpop.xlane.xlu0 %431
      %vm433 = vcmp.eq.f32.partialorder %v430, %v432
      %v434 = vsel %vm433, %v429, inf
      %435 = vmin.xlane.f32.xlu0 %v434
      %v436 = vpop.xlane.xlu0 %435
      %v437 = vcvt.f32.s32 %v436
      %v438 = vcvt.f32.s32 %v432
      %v439 = vshll.u32 %v438, 16
      %v440 = vadd.s32 %v439, %v437
      %vm441 = vcmp.eq.s32.totalorder %v286, 3
      %v442 = vand.u32 %v425, 63
      %v443 = vand.u32 %v440, 63
      %v444 = vsel %vm441, %v442, %v405
      %v445 = vsel %vm441, %v443, %v406
      %vm446 = vcmp.eq.s32.totalorder %v409, %v425
      %vm447 = vcmp.eq.s32.totalorder %v410, %v440
      %v448 = vsel %vm446, 2147483647, %v409
      %v449 = vsel %vm447, 2147483647, %v410
      %v450 = vsel %vm293, %v448, 2147483647
      %v451 = vand.u32 %v450, 65535
      %v452 = vshra.s32 %v450, 16
      %v453 = vcvt.s32.f32 %v451
      %v454 = vcvt.s32.f32 %v452
      %455 = vmin.xlane.f32.xlu0 %v454
      %v456 = vpop.xlane.xlu0 %455
      %vm457 = vcmp.eq.f32.partialorder %v454, %v456
      %v458 = vsel %vm457, %v453, inf
      %459 = vmin.xlane.f32.xlu0 %v458
      %v460 = vpop.xlane.xlu0 %459
      %v461 = vcvt.f32.s32 %v460
      %v462 = vcvt.f32.s32 %v456
      %v463 = vshll.u32 %v462, 16
      %v464 = vadd.s32 %v463, %v461
      %v465 = vsel %vm293, %v449, 2147483647
      %v466 = vand.u32 %v465, 65535
      %v467 = vshra.s32 %v465, 16
      %v468 = vcvt.s32.f32 %v466
      %v469 = vcvt.s32.f32 %v467
      %470 = vmin.xlane.f32.xlu0 %v469
      %v471 = vpop.xlane.xlu0 %470
      %vm472 = vcmp.eq.f32.partialorder %v469, %v471
      %v473 = vsel %vm472, %v468, inf
      %474 = vmin.xlane.f32.xlu0 %v473
      %v475 = vpop.xlane.xlu0 %474
      %v476 = vcvt.f32.s32 %v475
      %v477 = vcvt.f32.s32 %v471
      %v478 = vshll.u32 %v477, 16
      %v479 = vadd.s32 %v478, %v476
      %vm480 = vcmp.eq.s32.totalorder %v286, 4
      %v481 = vand.u32 %v464, 63
      %v482 = vand.u32 %v479, 63
      %v483 = vsel %vm480, %v481, %v444
      %v484 = vsel %vm480, %v482, %v445
      %vm485 = vcmp.eq.s32.totalorder %v448, %v464
      %vm486 = vcmp.eq.s32.totalorder %v449, %v479
      %v487 = vsel %vm485, 2147483647, %v448
      %v488 = vsel %vm486, 2147483647, %v449
      %v489 = vsel %vm293, %v487, 2147483647
      %v490 = vand.u32 %v489, 65535
      %v491 = vshra.s32 %v489, 16
      %v492 = vcvt.s32.f32 %v490
      %v493 = vcvt.s32.f32 %v491
      %494 = vmin.xlane.f32.xlu0 %v493
      %v495 = vpop.xlane.xlu0 %494
      %vm496 = vcmp.eq.f32.partialorder %v493, %v495
      %v497 = vsel %vm496, %v492, inf
      %498 = vmin.xlane.f32.xlu0 %v497
      %v499 = vpop.xlane.xlu0 %498
      %v500 = vcvt.f32.s32 %v499
      %v501 = vcvt.f32.s32 %v495
      %v502 = vshll.u32 %v501, 16
      %v503 = vadd.s32 %v502, %v500
      %v504 = vsel %vm293, %v488, 2147483647
      %v505 = vand.u32 %v504, 65535
      %v506 = vshra.s32 %v504, 16
      %v507 = vcvt.s32.f32 %v505
      %v508 = vcvt.s32.f32 %v506
      %509 = vmin.xlane.f32.xlu0 %v508
      %v510 = vpop.xlane.xlu0 %509
      %vm511 = vcmp.eq.f32.partialorder %v508, %v510
      %v512 = vsel %vm511, %v507, inf
      %513 = vmin.xlane.f32.xlu0 %v512
      %v514 = vpop.xlane.xlu0 %513
      %v515 = vcvt.f32.s32 %v514
      %v516 = vcvt.f32.s32 %v510
      %v517 = vshll.u32 %v516, 16
      %v518 = vadd.s32 %v517, %v515
      %vm519 = vcmp.eq.s32.totalorder %v286, 5
      %v520 = vand.u32 %v503, 63
      %v521 = vand.u32 %v518, 63
      %v522 = vsel %vm519, %v520, %v483
      %v523 = vsel %vm519, %v521, %v484
      %vm524 = vcmp.eq.s32.totalorder %v487, %v503
      %vm525 = vcmp.eq.s32.totalorder %v488, %v518
      %v526 = vsel %vm524, 2147483647, %v487
      %v527 = vsel %vm525, 2147483647, %v488
      %v528 = vsel %vm293, %v526, 2147483647
      %v529 = vand.u32 %v528, 65535
      %v530 = vshra.s32 %v528, 16
      %v531 = vcvt.s32.f32 %v529
      %v532 = vcvt.s32.f32 %v530
      %533 = vmin.xlane.f32.xlu0 %v532
      %v534 = vpop.xlane.xlu0 %533
      %vm535 = vcmp.eq.f32.partialorder %v532, %v534
      %v536 = vsel %vm535, %v531, inf
      %537 = vmin.xlane.f32.xlu0 %v536
      %v538 = vpop.xlane.xlu0 %537
      %v539 = vcvt.f32.s32 %v538
      %v540 = vcvt.f32.s32 %v534
      %v541 = vshll.u32 %v540, 16
      %v542 = vadd.s32 %v541, %v539
      %v543 = vsel %vm293, %v527, 2147483647
      %v544 = vand.u32 %v543, 65535
      %v545 = vshra.s32 %v543, 16
      %v546 = vcvt.s32.f32 %v544
      %v547 = vcvt.s32.f32 %v545
      %548 = vmin.xlane.f32.xlu0 %v547
      %v549 = vpop.xlane.xlu0 %548
      %vm550 = vcmp.eq.f32.partialorder %v547, %v549
      %v551 = vsel %vm550, %v546, inf
      %552 = vmin.xlane.f32.xlu0 %v551
      %v553 = vpop.xlane.xlu0 %552
      %v554 = vcvt.f32.s32 %v553
      %v555 = vcvt.f32.s32 %v549
      %v556 = vshll.u32 %v555, 16
      %v557 = vadd.s32 %v556, %v554
      %vm558 = vcmp.eq.s32.totalorder %v286, 6
      %v559 = vand.u32 %v542, 63
      %v560 = vand.u32 %v557, 63
      %v561 = vsel %vm558, %v559, %v522
      %v562 = vsel %vm558, %v560, %v523
      %vm563 = vcmp.eq.s32.totalorder %v526, %v542
      %vm564 = vcmp.eq.s32.totalorder %v527, %v557
      %v565 = vsel %vm563, 2147483647, %v526
      %v566 = vsel %vm564, 2147483647, %v527
      %v567 = vsel %vm293, %v565, 2147483647
      %v568 = vand.u32 %v567, 65535
      %v569 = vshra.s32 %v567, 16
      %v570 = vcvt.s32.f32 %v568
      %v571 = vcvt.s32.f32 %v569
      %572 = vmin.xlane.f32.xlu0 %v571
      %v573 = vpop.xlane.xlu0 %572
      %vm574 = vcmp.eq.f32.partialorder %v571, %v573
      %v575 = vsel %vm574, %v570, inf
      %576 = vmin.xlane.f32.xlu0 %v575
      %v577 = vpop.xlane.xlu0 %576
      %v578 = vcvt.f32.s32 %v577
      %v579 = vcvt.f32.s32 %v573
      %v580 = vshll.u32 %v579, 16
      %v581 = vadd.s32 %v580, %v578
      %v582 = vsel %vm293, %v566, 2147483647
      %v583 = vand.u32 %v582, 65535
      %v584 = vshra.s32 %v582, 16
      %v585 = vcvt.s32.f32 %v583
      %v586 = vcvt.s32.f32 %v584
      %587 = vmin.xlane.f32.xlu0 %v586
      %v588 = vpop.xlane.xlu0 %587
      %vm589 = vcmp.eq.f32.partialorder %v586, %v588
      %v590 = vsel %vm589, %v585, inf
      %591 = vmin.xlane.f32.xlu0 %v590
      %v592 = vpop.xlane.xlu0 %591
      %v593 = vcvt.f32.s32 %v592
      %v594 = vcvt.f32.s32 %v588
      %v595 = vshll.u32 %v594, 16
      %v596 = vadd.s32 %v595, %v593
      %vm597 = vcmp.eq.s32.totalorder %v286, 7
      %v598 = vand.u32 %v581, 63
      %v599 = vand.u32 %v596, 63
      %v600 = vsel %vm597, %v598, %v561
      %v601 = vsel %vm597, %v599, %v562
      %602 = vst.msk [vmem:[%s198] sm:$0xff] %vm203, %v600
      %603 = vst.msk [vmem:[%s198 + $0x8] sm:$0xff] %vm203, %v601
      %s604 = smul.u32 2, %s18
      %p605 = scmp.lt.s32.totalorder %s17, 1
      %s606 = scalar_select %p605, %s17, 1
      %p607 = scmp.lt.s32.totalorder %s604, 1
      %s608 = scalar_select %p607, %s604, 1
      %s609 = smul.addr %s606, 2
      %s610 = sadd.s32 %s608, %s609
      %s611 = smul.addr %s610, 8
      %s612 = scalar_lea.vmem %s2, %s611
      // Predicated region
      $region29: #{tpu_custom_call.1} parent=27 // pred_check
        %p613 = pneg %p99
      $region30: #{tpu_custom_call.1} parent=27 // pred_check_branch
        %615 = sbr.rel (%p613) target = $region32
      $region31: #{tpu_custom_call.1} parent=27 // pred_region
        %s616 = smul.u32 2, %s18
      $region32: #{tpu_custom_call.1} parent=27 // pred_fallthru
        _
    $region28: #{tpu_custom_call.1} parent=5 // pred_fallthru
      _
    %p617 = scmp.le.s32.totalorder 2, %s8
    // Predicated region
    $region33: #{tpu_custom_call.1} parent=5 // pred_check
      %p618 = pneg %p617
    $region34: #{tpu_custom_call.1} parent=5 // pred_check_branch
      %620 = sbr.rel (%p618) target = $region36
    $region35: #{tpu_custom_call.1} parent=5 // pred_region
      %s621 = ssub.s32 %s8, 2
      // Predicated region
      $region37: #{tpu_custom_call.1} parent=35 // pred_check
        %p622 = pneg %p105
      $region38: #{tpu_custom_call.1} parent=35 // pred_check_branch
        %624 = sbr.rel (%p622) target = $region40
      $region39: #{tpu_custom_call.1} parent=35 // pred_region
        %s625 = smul.u32 2, %s20
        %p626 = scmp.lt.s32.totalorder %s19, 1
        %s627 = scalar_select %p626, %s19, 1
        %p628 = scmp.lt.s32.totalorder %s625, 1
        %s629 = scalar_select %p628, %s625, 1
        %s630 = smul.addr %s627, 2
        %s631 = sadd.s32 %s629, %s630
        %s632 = smul.addr %s631, 8
        %s633 = scalar_lea.vmem %s2, %s632
      $region40: #{tpu_custom_call.1} parent=35 // pred_fallthru
        _
    $region36: #{tpu_custom_call.1} parent=5 // pred_fallthru
      _
  $region6: #{tpu_custom_call.1} parent=0 // loop_footer
    %s12 = sadd.s32 1, %s8
  $region7: #{tpu_custom_call.1} parent=0 // loop_footer_branch
    %7 = sbr.rel target = $region3
  $region8: #{tpu_custom_call.1} parent=0 // loop_exit
    _

</llo_original>
